<compile_context>
chip_gen: v6e
topology: v6e:2x2x1
jax: 0.10.0
libtpu: 0.0.40
codegen_flags: <defaults>
</compile_context>

<pallas_src>
import functools
import math

import jax
import jax.numpy as jnp
from jax import lax
from jax.experimental import pallas as pl
from jax.experimental.pallas import tpu as pltpu


def _round_up(x, m):
    return (x + m - 1) // m * m


def _ntxent_kernel(zjs_hbm, zis_hbm, out_ref, panel_ref, panel_t_ref, acc_ref,
                   *, temperature, batch_size, n_pad, block_rows, block_cols):
    b = batch_size
    n = 2 * b
    tm = block_rows
    tn = block_cols
    num_col = n_pad // tn
    d = panel_ref.shape[1]
    inv_t = 1.0 / float(temperature)
    step = pl.program_id(0)

    @pl.when(step == 0)
    def _init():
        def init_body(zjs_buf, zis_buf, sem):
            # One-shot HBM -> VMEM copy of the raw inputs (released after init).
            cj = pltpu.make_async_copy(zjs_hbm, zjs_buf, sem.at[0])
            ci = pltpu.make_async_copy(zis_hbm, zis_buf, sem.at[1])
            cj.start(); ci.start(); cj.wait(); ci.wait()

            zjs = zjs_buf[...].astype(jnp.float32)                    # (B, D)
            zis = zis_buf[...].astype(jnp.float32)                    # (B, D)
            # Row L2-normalization (CosineSimilarity eps=1e-8 norm clamp).
            inv_nj = lax.rsqrt(jnp.maximum(
                jnp.sum(zjs * zjs, axis=-1, keepdims=True), 1e-16))
            inv_ni = lax.rsqrt(jnp.maximum(
                jnp.sum(zis * zis, axis=-1, keepdims=True), 1e-16))
            zjs_n = zjs * inv_nj
            zis_n = zis * inv_ni

            # Resident normalized panel: representations = cat([zjs, zis]),
            # halves written directly (no concat temp), padded rows zeroed.
            panel_ref[pl.ds(0, b), :] = zjs_n.astype(panel_ref.dtype)
            panel_ref[pl.ds(b, b), :] = zis_n.astype(panel_ref.dtype)
            if n_pad > n:
                panel_ref[pl.ds(n, n_pad - n), :] = jnp.zeros(
                    (n_pad - n, d), panel_ref.dtype)

            # One-time transposed copy (D, N_pad) stored as (num_col, D, TN)
            # so each step is a plain (TM, D) @ (D, TN) MXU feed.
            def tr_body(j, carry):
                c0 = pl.multiple_of(j * tn, 128)
                chunk = panel_ref[pl.ds(c0, tn), :].astype(jnp.float32)
                panel_t_ref[j] = jnp.transpose(chunk, (1, 0)).astype(
                    panel_t_ref.dtype)
                return carry
            lax.fori_loop(0, num_col, tr_body, 0, unroll=num_col <= 8)

            # Sum of positive logits: cos(zjs_i, zis_i)/t appears twice (rows
            # i and i + B), so sum_r pos_r = 2 * sum_i cos_i / t.
            acc_ref[0] = -2.0 * inv_t * jnp.sum(zjs_n * zis_n)

        pl.run_scoped(init_body,
                      pltpu.VMEM(zjs_hbm.shape, zjs_hbm.dtype),
                      pltpu.VMEM(zis_hbm.shape, zis_hbm.dtype),
                      pltpu.SemaphoreType.DMA((2,)))

    # ---- row block [r0, r0 + tm): aligned, tm | n_pad, no clamp/dedup. ----
    r0 = pl.multiple_of(step * tm, 128)
    lhs = panel_ref[pl.ds(r0, tm), :]                                 # (TM, D) bf16

    col_ids = lax.broadcasted_iota(jnp.int32, (tm, tn), 1)            # hoisted
    row_ids = r0 + lax.broadcasted_iota(jnp.int32, (tm, 1), 0)        # global rows

    def col_body(j, row_sum):
        # (TM, TN) cosine block from the pre-transposed panel chunk.
        s = jnp.dot(lhs, panel_t_ref[j], preferred_element_type=jnp.float32)
        # Cosines <= 1  =>  constant shift, no per-row max pass needed.
        p = jnp.exp((s - 1.0) * inv_t)
        # Exact self-term removal: mask this block's diagonal element.
        p = jnp.where(col_ids == (row_ids - j * tn), 0.0, p)
        return row_sum + jnp.sum(p, axis=-1, keepdims=True)

    row_sum = lax.fori_loop(0, num_col, col_body,
                            jnp.zeros((tm, 1), jnp.float32),
                            unroll=num_col <= 8)

    if n_pad > n:
        # Padded columns are zero rows: each contributes exactly exp(-1/t).
        row_sum = row_sum - (n_pad - n) * math.exp(-inv_t)
    row_sum = jnp.maximum(row_sum, 1e-37)
    lse = jnp.log(row_sum) + inv_t                                    # (TM, 1)
    if n % tm:
        lse = jnp.where(row_ids < n, lse, 0.0)                        # drop padded rows
    acc_ref[0] += jnp.sum(lse)

    @pl.when(step == pl.num_programs(0) - 1)
    def _finalize():
        out_ref[0, 0] = acc_ref[0] / n                                # CE(sum) / (2B)


def _vmem_limit_bytes():
    """Raise the scoped-VMEM cap within the chip's physical VMEM budget."""
    try:
        cap = int(pltpu.get_tpu_info().vmem_capacity_bytes)
    except Exception:
        return None  # fall back to the compiler default
    # v7x (64 MiB): ~48 MiB;  v5e/v6e (128 MiB): 96 MiB.
    return max(32 << 20, min(cap - (16 << 20), 96 << 20))


def ntxent_loss(zis, zjs, temperature=0.5):
    """NT-Xent loss. zis, zjs: (B, D). Returns a scalar float32 loss."""
    assert zis.shape == zjs.shape and zis.ndim == 2
    b, d = zis.shape
    n = 2 * b

    # Lane-dense column padding + tile sizes (tm | n_pad, tn | n_pad).
    n_pad = _round_up(n, 128)
    if n_pad <= 1024:
        tn = n_pad                       # single column chunk
    else:
        tn = 512                         # in-kernel column tiling for large N
        n_pad = _round_up(n, tn)
    tm = 256 if n_pad % 256 == 0 else 128
    grid = (pl.cdiv(n, tm),)

    kernel = functools.partial(
        _ntxent_kernel, temperature=float(temperature), batch_size=b,
        n_pad=n_pad, block_rows=tm, block_cols=tn)

    out = pl.pallas_call(
        kernel,
        out_shape=jax.ShapeDtypeStruct((1, 1), jnp.float32),
        grid=grid,
        in_specs=[
            pl.BlockSpec(memory_space=pl.ANY),   # zjs: HBM, copied once at step 0
            pl.BlockSpec(memory_space=pl.ANY),   # zis: HBM, copied once at step 0
        ],
        out_specs=pl.BlockSpec((1, 1), lambda i: (0, 0),
                               memory_space=pltpu.MemorySpace.SMEM),
        scratch_shapes=[
            pltpu.VMEM((n_pad, d), jnp.bfloat16),            # normalized panel (rows)
            pltpu.VMEM((n_pad // tn, d, tn), jnp.bfloat16),  # transposed panel (cols)
            pltpu.SMEM((1,), jnp.float32),                   # loss accumulator
        ],
        compiler_params=pltpu.CompilerParams(
            dimension_semantics=("arbitrary",),              # sequential reduction
            vmem_limit_bytes=_vmem_limit_bytes(),
        ),
    )(zjs, zis)
    return out[0, 0]


def _ntxent_ref(zis, zjs, temperature=0.5):
    """Plain-JAX reference mirroring the PyTorch module semantics."""
    b = zis.shape[0]
    rep = jnp.concatenate([zjs, zis], axis=0).astype(jnp.float32)
    n = 2 * b
    norm = jnp.linalg.norm(rep, axis=-1, keepdims=True)
    sim = (rep @ rep.T) / jnp.maximum(norm * norm.T, 1e-8)
    s = sim / temperature
    idx = jnp.arange(n)
    pair = jnp.where(idx < b, idx + b, idx - b)
    pos = s[idx, pair]
    masked = jnp.where(jnp.eye(n, dtype=bool), -jnp.inf, s)
    lse = jax.scipy.special.logsumexp(masked, axis=-1)
    return jnp.sum(lse - pos) / n


if __name__ == "__main__":
    key = jax.random.PRNGKey(0)

    # Small shape (typical tiny-scale usage of the module).
    B, D = 4, 32
    k1, k2 = jax.random.split(key)
    zis = jax.random.normal(k1, (B, D), dtype=jnp.float32)
    zjs = jax.random.normal(k2, (B, D), dtype=jnp.float32)
    loss = jax.block_until_ready(ntxent_loss(zis, zjs, temperature=0.5))
    ref = jax.block_until_ready(_ntxent_ref(zis, zjs, temperature=0.5))
    assert jnp.isfinite(loss), "loss is not finite"
    assert abs(float(loss) - float(ref)) < 5e-2, (float(loss), float(ref))

    # Larger shape exercising the row-tiled grid, lane padding (N=320 -> 384)
    # and the padded-row / padded-column correction paths.
    B2, D2 = 160, 64
    k3, k4 = jax.random.split(k2)
    zis2 = jax.random.normal(k3, (B2, D2), dtype=jnp.float32)
    zjs2 = jax.random.normal(k4, (B2, D2), dtype=jnp.float32)
    loss2 = jax.block_until_ready(ntxent_loss(zis2, zjs2, temperature=0.5))
    ref2 = jax.block_until_ready(_ntxent_ref(zis2, zjs2, temperature=0.5))
    assert jnp.isfinite(loss2), "tiled loss is not finite"
    assert abs(float(loss2) - float(ref2)) < 5e-2, (float(loss2), float(ref2))

    print("KERNEL_OK")
</pallas_src>

<mosaic_0001>
module attributes {stable_mosaic.version = 11 : i64} {
  func.func @_ntxent_kernel(%arg0: i32, %arg1: memref<4x32xf32, #tpu.memory_space<any>>, %arg2: memref<4x32xf32, #tpu.memory_space<any>>, %arg3: memref<1x1xf32, #tpu.memory_space<smem>>, %arg4: memref<128x32xbf16, #tpu.memory_space<vmem>>, %arg5: memref<1x32x128xbf16, #tpu.memory_space<vmem>>, %arg6: memref<1xf32, #tpu.memory_space<smem>>) attributes {dimension_semantics = [#tpu.dimension_semantics<arbitrary>], iteration_bounds = array<i64: 1>, scalar_prefetch = 0 : i64, scratch_operands = 3 : i64, tpu.core_type = #tpu.core_type<tc>, window_params = [{}, {}, {transform_indices = @transform_2, window_bounds = array<i64: 1, 1>}]} {
    %c0_i32 = arith.constant 0 : i32
    %0 = arith.cmpi eq, %arg0, %c0_i32 : i32
    %1 = arith.extui %0 : i1 to i32
    %c0_i32_0 = arith.constant 0 : i32
    %2 = arith.cmpi ne, %1, %c0_i32_0 : i32
    scf.if %2 {
      "tpu.region"() ({
        %alloca = memref.alloca() : memref<4x32xf32, #tpu.memory_space<vmem>>
        %alloca_19 = memref.alloca() : memref<4x32xf32, #tpu.memory_space<vmem>>
        %52 = tpu.sem_alloc : memref<2x!tpu.dma_semaphore, #tpu.memory_space<semaphore_mem>>
        %c0_i32_20 = arith.constant 0 : i32
        %53 = tpu.memref_slice %52[%c0_i32_20] : memref<2x!tpu.dma_semaphore, #tpu.memory_space<semaphore_mem>> -> memref<1x!tpu.dma_semaphore, #tpu.memory_space<semaphore_mem>>
        %54 = tpu.memref_squeeze %53 : memref<1x!tpu.dma_semaphore, #tpu.memory_space<semaphore_mem>> -> memref<!tpu.dma_semaphore, #tpu.memory_space<semaphore_mem>>
        tpu.enqueue_dma source(%arg1 : memref<4x32xf32, #tpu.memory_space<any>>) target(%alloca : memref<4x32xf32, #tpu.memory_space<vmem>>) target_semaphore(%54 : memref<!tpu.dma_semaphore, #tpu.memory_space<semaphore_mem>>)
        %c1_i32_21 = arith.constant 1 : i32
        %55 = tpu.memref_slice %52[%c1_i32_21] : memref<2x!tpu.dma_semaphore, #tpu.memory_space<semaphore_mem>> -> memref<1x!tpu.dma_semaphore, #tpu.memory_space<semaphore_mem>>
        %56 = tpu.memref_squeeze %55 : memref<1x!tpu.dma_semaphore, #tpu.memory_space<semaphore_mem>> -> memref<!tpu.dma_semaphore, #tpu.memory_space<semaphore_mem>>
        tpu.enqueue_dma source(%arg2 : memref<4x32xf32, #tpu.memory_space<any>>) target(%alloca_19 : memref<4x32xf32, #tpu.memory_space<vmem>>) target_semaphore(%56 : memref<!tpu.dma_semaphore, #tpu.memory_space<semaphore_mem>>)
        %c0_i32_22 = arith.constant 0 : i32
        %57 = tpu.memref_slice %52[%c0_i32_22] : memref<2x!tpu.dma_semaphore, #tpu.memory_space<semaphore_mem>> -> memref<1x!tpu.dma_semaphore, #tpu.memory_space<semaphore_mem>>
        %58 = tpu.memref_squeeze %57 : memref<1x!tpu.dma_semaphore, #tpu.memory_space<semaphore_mem>> -> memref<!tpu.dma_semaphore, #tpu.memory_space<semaphore_mem>>
        tpu.wait_dma2 semaphore(%58 : memref<!tpu.dma_semaphore, #tpu.memory_space<semaphore_mem>>) src(%arg1 : memref<4x32xf32, #tpu.memory_space<any>>) dst(%alloca : memref<4x32xf32, #tpu.memory_space<vmem>>)
        %c1_i32_23 = arith.constant 1 : i32
        %59 = tpu.memref_slice %52[%c1_i32_23] : memref<2x!tpu.dma_semaphore, #tpu.memory_space<semaphore_mem>> -> memref<1x!tpu.dma_semaphore, #tpu.memory_space<semaphore_mem>>
        %60 = tpu.memref_squeeze %59 : memref<1x!tpu.dma_semaphore, #tpu.memory_space<semaphore_mem>> -> memref<!tpu.dma_semaphore, #tpu.memory_space<semaphore_mem>>
        tpu.wait_dma2 semaphore(%60 : memref<!tpu.dma_semaphore, #tpu.memory_space<semaphore_mem>>) src(%arg2 : memref<4x32xf32, #tpu.memory_space<any>>) dst(%alloca_19 : memref<4x32xf32, #tpu.memory_space<vmem>>)
        %c0_24 = arith.constant 0 : index
        %c0_25 = arith.constant 0 : index
        %61 = vector.load %alloca[%c0_24, %c0_25] : memref<4x32xf32, #tpu.memory_space<vmem>>, vector<4x32xf32>
        %c0_26 = arith.constant 0 : index
        %c0_27 = arith.constant 0 : index
        %62 = vector.load %alloca_19[%c0_26, %c0_27] : memref<4x32xf32, #tpu.memory_space<vmem>>, vector<4x32xf32>
        %63 = arith.mulf %61, %61 : vector<4x32xf32>
        %cst_28 = arith.constant dense<0.000000e+00> : vector<4xf32>
        %64 = vector.multi_reduction <add>, %63, %cst_28 [1] : vector<4x32xf32> to vector<4xf32>
        %65 = vector.shape_cast %64 : vector<4xf32> to vector<4x1xf32>
        %cst_29 = arith.constant 1.000000e-16 : f32
        %66 = vector.broadcast %cst_29 : f32 to vector<4x1xf32>
        %67 = arith.maximumf %65, %66 : vector<4x1xf32>
        %68 = math.rsqrt %67 : vector<4x1xf32>
        %69 = arith.mulf %62, %62 : vector<4x32xf32>
        %cst_30 = arith.constant dense<0.000000e+00> : vector<4xf32>
        %70 = vector.multi_reduction <add>, %69, %cst_30 [1] : vector<4x32xf32> to vector<4xf32>
        %71 = vector.shape_cast %70 : vector<4xf32> to vector<4x1xf32>
        %cst_31 = arith.constant 1.000000e-16 : f32
        %72 = vector.broadcast %cst_31 : f32 to vector<4x1xf32>
        %73 = arith.maximumf %71, %72 : vector<4x1xf32>
        %74 = math.rsqrt %73 : vector<4x1xf32>
        %75 = vector.broadcast %68 : vector<4x1xf32> to vector<4x32xf32>
        %76 = arith.mulf %61, %75 : vector<4x32xf32>
        %77 = vector.broadcast %74 : vector<4x1xf32> to vector<4x32xf32>
        %78 = arith.mulf %62, %77 : vector<4x32xf32>
        %79 = arith.truncf %76 : vector<4x32xf32> to vector<4x32xbf16>
        %c0_32 = arith.constant 0 : index
        %c0_33 = arith.constant 0 : index
        %80 = vector.load %arg4[%c0_32, %c0_33] : memref<128x32xbf16, #tpu.memory_space<vmem>>, vector<4x32xbf16>
        tpu.vector_store %arg4[%c0_32, %c0_33], %79 {strides = array<i32>} : memref<128x32xbf16, #tpu.memory_space<vmem>>, vector<4x32xbf16>,
        %81 = arith.truncf %78 : vector<4x32xf32> to vector<4x32xbf16>
        %c4 = arith.constant 4 : index
        %c0_34 = arith.constant 0 : index
        %82 = vector.load %arg4[%c4, %c0_34] : memref<128x32xbf16, #tpu.memory_space<vmem>>, vector<4x32xbf16>
        tpu.vector_store %arg4[%c4, %c0_34], %81 {strides = array<i32>} : memref<128x32xbf16, #tpu.memory_space<vmem>>, vector<4x32xbf16>,
        %cst_35 = arith.constant 0.000000e+00 : bf16
        %83 = vector.broadcast %cst_35 : bf16 to vector<120x32xbf16>
        %c8 = arith.constant 8 : index
        %c0_36 = arith.constant 0 : index
        %84 = vector.load %arg4[%c8, %c0_36] : memref<128x32xbf16, #tpu.memory_space<vmem>>, vector<120x32xbf16>
        tpu.vector_store %arg4[%c8, %c0_36], %83 {strides = array<i32>} : memref<128x32xbf16, #tpu.memory_space<vmem>>, vector<120x32xbf16>,
        %c0_i32_37 = arith.constant 0 : i32
        %c0_i32_38 = arith.constant 0 : i32
        %c128_i32_39 = arith.constant 128 : i32
        %85 = arith.muli %c0_i32_38, %c128_i32_39 : i32
        %86 = tpu.assume_multiple %85, 128 : i32
        %87 = arith.index_cast %86 : i32 to index
        %c0_40 = arith.constant 0 : index
        %88 = vector.load %arg4[%87, %c0_40] : memref<128x32xbf16, #tpu.memory_space<vmem>>, vector<128x32xbf16>
        %89 = arith.extf %88 : vector<128x32xbf16> to vector<128x32xf32>
        %90 = tpu.transpose %89, [1, 0] : vector<128x32xf32> -> vector<32x128xf32>
        %91 = arith.truncf %90 : vector<32x128xf32> to vector<32x128xbf16>
        %92 = arith.index_cast %c0_i32_38 : i32 to index
        %c0_41 = arith.constant 0 : index
        %c0_42 = arith.constant 0 : index
        %93 = vector.load %arg5[%92, %c0_41, %c0_42] : memref<1x32x128xbf16, #tpu.memory_space<vmem>>, vector<1x32x128xbf16>
        %94 = vector.shape_cast %93 : vector<1x32x128xbf16> to vector<32x128xbf16>
        %95 = vector.shape_cast %91 : vector<32x128xbf16> to vector<1x32x128xbf16>
        tpu.vector_store %arg5[%92, %c0_41, %c0_42], %95 {strides = array<i32>} : memref<1x32x128xbf16, #tpu.memory_space<vmem>>, vector<1x32x128xbf16>,
        %c1_i32_43 = arith.constant 1 : i32
        %96 = arith.mulf %76, %78 : vector<4x32xf32>
        %97 = vector.shape_cast %96 : vector<4x32xf32> to vector<1x4x32xf32>
        %cst_44 = arith.constant dense<0.000000e+00> : vector<1xf32>
        %98 = vector.multi_reduction <add>, %97, %cst_44 [1, 2] : vector<1x4x32xf32> to vector<1xf32>
        %99 = vector.shape_cast %98 : vector<1xf32> to vector<1x1x1xf32>
        %100 = vector.extract %99[0, 0, 0] : f32 from vector<1x1x1xf32>
        %cst_45 = arith.constant -4.000000e+00 : f32
        %101 = arith.mulf %cst_45, %100 : f32
        %c0_46 = arith.constant 0 : index
        %102 = memref.load %arg6[%c0_46] : memref<1xf32, #tpu.memory_space<smem>>
        memref.store %101, %arg6[%c0_46] : memref<1xf32, #tpu.memory_space<smem>>
        tpu.yield
      }) : () -> ()
    } else {
    }
    %c128_i32 = arith.constant 128 : i32
    %3 = arith.muli %arg0, %c128_i32 : i32
    %4 = tpu.assume_multiple %3, 128 : i32
    %5 = arith.index_cast %4 : i32 to index
    %c0 = arith.constant 0 : index
    %6 = vector.load %arg4[%5, %c0] : memref<128x32xbf16, #tpu.memory_space<vmem>>, vector<128x32xbf16>
    %7 = tpu.iota {dimensions = array<i32: 1>} : vector<128x128xi32>
    %8 = tpu.iota {dimensions = array<i32: 0>} : vector<128x1xi32>
    %9 = vector.broadcast %4 : i32 to vector<128x1xi32>
    %10 = arith.addi %9, %8 : vector<128x1xi32>
    %cst = arith.constant 0.000000e+00 : f32
    %11 = vector.broadcast %cst : f32 to vector<128x1xf32>
    %c0_i32_1 = arith.constant 0 : i32
    %12 = arith.index_cast %c0_i32_1 : i32 to index
    %c0_2 = arith.constant 0 : index
    %c0_3 = arith.constant 0 : index
    %13 = vector.load %arg5[%12, %c0_2, %c0_3] : memref<1x32x128xbf16, #tpu.memory_space<vmem>>, vector<1x32x128xbf16>
    %14 = vector.shape_cast %13 : vector<1x32x128xbf16> to vector<32x128xbf16>
    %cst_4 = arith.constant dense<0.000000e+00> : vector<128x128xf32>
    %15 = tpu.matmul %6, %14, %cst_4 {dimension_numbers = #tpu.dot_dimension_numbers<[1], [0], [0], [1], [0, 0, 1, 1], [], []>} : vector<128x32xbf16>, vector<32x128xbf16>, vector<128x128xf32> -> vector<128x128xf32>
    %cst_5 = arith.constant 1.000000e+00 : f32
    %16 = vector.broadcast %cst_5 : f32 to vector<128x128xf32>
    %17 = arith.subf %15, %16 : vector<128x128xf32>
    %cst_6 = arith.constant 2.000000e+00 : f32
    %18 = vector.broadcast %cst_6 : f32 to vector<128x128xf32>
    %19 = arith.mulf %17, %18 : vector<128x128xf32>
    %20 = math.exp %19 : vector<128x128xf32>
    %c128_i32_7 = arith.constant 128 : i32
    %21 = arith.muli %c0_i32_1, %c128_i32_7 : i32
    %22 = vector.broadcast %21 : i32 to vector<128x1xi32>
    %23 = arith.subi %10, %22 : vector<128x1xi32>
    %24 = vector.broadcast %23 : vector<128x1xi32> to vector<128x128xi32>
    %25 = arith.cmpi eq, %7, %24 : vector<128x128xi32>
    %cst_8 = arith.constant 0.000000e+00 : f32
    %26 = vector.broadcast %cst_8 : f32 to vector<128x128xf32>
    %27 = arith.select %25, %26, %20 : vector<128x128xi1>, vector<128x128xf32>
    %cst_9 = arith.constant dense<0.000000e+00> : vector<128xf32>
    %28 = vector.multi_reduction <add>, %27, %cst_9 [1] : vector<128x128xf32> to vector<128xf32>
    %29 = vector.shape_cast %28 : vector<128xf32> to vector<128x1xf32>
    %30 = arith.addf %11, %29 : vector<128x1xf32>
    %c1_i32 = arith.constant 1 : i32
    %cst_10 = arith.constant 16.2402344 : f32
    %31 = vector.broadcast %cst_10 : f32 to vector<128x1xf32>
    %32 = arith.subf %30, %31 : vector<128x1xf32>
    %cst_11 = arith.constant 9.99999991E-38 : f32
    %33 = vector.broadcast %cst_11 : f32 to vector<128x1xf32>
    %34 = arith.maximumf %32, %33 : vector<128x1xf32>
    %35 = math.log %34 : vector<128x1xf32>
    %cst_12 = arith.constant 2.000000e+00 : f32
    %36 = vector.broadcast %cst_12 : f32 to vector<128x1xf32>
    %37 = arith.addf %35, %36 : vector<128x1xf32>
    %c8_i32 = arith.constant 8 : i32
    %38 = vector.broadcast %c8_i32 : i32 to vector<128x1xi32>
    %39 = arith.cmpi slt, %10, %38 : vector<128x1xi32>
    %cst_13 = arith.constant 0.000000e+00 : f32
    %40 = vector.broadcast %cst_13 : f32 to vector<128x1xf32>
    %41 = arith.select %39, %37, %40 : vector<128x1xi1>, vector<128x1xf32>
    %c0_14 = arith.constant 0 : index
    %42 = memref.load %arg6[%c0_14] : memref<1xf32, #tpu.memory_space<smem>>
    %43 = vector.shape_cast %41 : vector<128x1xf32> to vector<1x128x1xf32>
    %cst_15 = arith.constant dense<0.000000e+00> : vector<1xf32>
    %44 = vector.multi_reduction <add>, %43, %cst_15 [1, 2] : vector<1x128x1xf32> to vector<1xf32>
    %45 = vector.shape_cast %44 : vector<1xf32> to vector<1x1x1xf32>
    %46 = vector.extract %45[0, 0, 0] : f32 from vector<1x1x1xf32>
    %47 = arith.addf %42, %46 : f32
    %c0_16 = arith.constant 0 : index
    %48 = memref.load %arg6[%c0_16] : memref<1xf32, #tpu.memory_space<smem>>
    memref.store %47, %arg6[%c0_16] : memref<1xf32, #tpu.memory_space<smem>>
    %c0_i32_17 = arith.constant 0 : i32
    %49 = arith.cmpi eq, %arg0, %c0_i32_17 : i32
    %50 = arith.extui %49 : i1 to i32
    %c0_i32_18 = arith.constant 0 : i32
    %51 = arith.cmpi ne, %50, %c0_i32_18 : i32
    scf.if %51 {
      %c0_19 = arith.constant 0 : index
      %52 = memref.load %arg6[%c0_19] : memref<1xf32, #tpu.memory_space<smem>>
      %cst_20 = arith.constant 8.000000e+00 : f32
      %53 = arith.divf %52, %cst_20 : f32
      %c0_21 = arith.constant 0 : index
      %c0_22 = arith.constant 0 : index
      %54 = memref.load %arg3[%c0_21, %c0_22] : memref<1x1xf32, #tpu.memory_space<smem>>
      memref.store %53, %arg3[%c0_21, %c0_22] : memref<1x1xf32, #tpu.memory_space<smem>>
    } else {
    }
    return
  }
  func.func @transform_2(%arg0: i32) -> (i32, i32) {
    %c0_i32 = arith.constant 0 : i32
    %c0_i32_0 = arith.constant 0 : i32
    %c0_i32_1 = arith.constant 0 : i32
    return %c0_i32, %c0_i32_0 : i32, i32
  }
}

</mosaic_0001>

<llo_original>
// kernel: tpu_custom_call.1
$region0: #{tpu_custom_call.1}
  #allocation0 [shape = 'u32[]', space=smem, size = 0x4, offset = 0x4, fixed_abs, tag = 'smem constant byte address 0x4 - core index']
  #allocation1 [shape = 'u32[144,128]{1,0:T(1,128)}', space=vmem, size = 0x12000, scoped, tag = 'internal scratch']
  #allocation2 [shape = 'bf16[128,32]{1,0:T(8,128)(2,1)}', space=vmem, size = 0x8000, scoped, tag = 'scratch operand']
  #allocation3 [shape = 'bf16[1,32,128]{2,1,0:T(8,128)(2,1)}', space=vmem, size = 0x2000, scoped, tag = 'scratch operand']
  #allocation4 [shape = 'f32[1]{0:T(128)}', space=smem, size = 0x200, scoped, tag = 'scratch operand']
  #allocation10 [shape = 's32[]', space=sflag, size = 0x4, offset = 0, fixed_abs, tag = 'sflag constant byte address 0x0 - dummy sync flag']
  #allocation11 [shape = 's32[]', space=sflag, size = 0x4, offset = 0, fixed_abs, tag = 'sflag constant byte address 0x0 - dummy sync flag']
  #allocation12 [shape = 'u32[]', space=smem, size = 0x4, offset = 0x44, fixed_abs, tag = 'smem constant byte address 0x44 - assertion arg 0']
  #allocation13 [shape = 'u32[]', space=smem, size = 0x4, offset = 0x48, fixed_abs, tag = 'smem constant byte address 0x48 - assertion arg 1']
  #allocation14 [shape = 's32[]', space=sflag, size = 0x4, offset = 0, fixed_abs, tag = 'sflag constant byte address 0x0 - dummy sync flag']
  #allocation15 [shape = 's32[]', space=sflag, size = 0x4, offset = 0, fixed_abs, tag = 'sflag constant byte address 0x0 - dummy sync flag']
  %s0 = inlined_call_operand.hbm [shape: f32[4,32], index: 0, kind: input, shape index: {}]
  %s1 = inlined_call_operand.hbm [shape: f32[4,32], index: 1, kind: input, shape index: {}]
  %s2 = inlined_call_operand.hbm [shape: f32[1,1], index: 2, kind: output, shape index: {}]
  %s3 = sld [smem:[#allocation0]]
  $region27: #{tpu_custom_call.1} parent=0
    _
  %s5 = ssub.s32 1, %s3
  %s6 = scalar_select 0, %s5, %s3
  $region1: #{tpu_custom_call.1} parent=0
    #allocation5 [shape = 'u8[512]{0}', space=smem, size = 0x200, scoped, tag = 'output window, operand 0, single buffered']
    #allocation6 [shape = 's32[1]{0}', space=sflag, size = 0x4, scoped, tag = 'scoped memory for tpu_custom_call.1']
    %7 = vsyncpa [#allocation6], 0
    %p9 = scmp.eq.s32.totalorder 0, 0
    // Predicated region
    $region2: #{tpu_custom_call.1} parent=1 // pred_check
      %p10 = pneg %p9
    $region3: #{tpu_custom_call.1} parent=1 // pred_check_branch
      %12 = sbr.rel (%p10) target = $region5
    $region4: #{tpu_custom_call.1} parent=1 // pred_region
      $region6: #{tpu_custom_call.1} parent=4
        #allocation7 [shape = 'u8[2048]{0}', space=vmem, size = 0x800, scoped, tag = 'scoped memory for tpu_custom_call.1']
        #allocation8 [shape = 'u8[2048]{0}', space=vmem, size = 0x800, scoped, tag = 'scoped memory for tpu_custom_call.1']
        #allocation9 [shape = 's32[2]{0}', space=sflag, size = 0x8, scoped, tag = 'scoped memory for tpu_custom_call.1']
        // Predicated region
        $region7: #{tpu_custom_call.1} parent=6 // pred_check
          _
        $region8: #{tpu_custom_call.1} parent=6 // pred_check_branch
          %14 = sbr.rel target = $region10
        $region9: #{tpu_custom_call.1} parent=6 // pred_region
          %15 = sst [smem:[#allocation12]] [#allocation11]
          %16 = sst [smem:[#allocation13]] [#allocation10]
        $region10: #{tpu_custom_call.1} parent=6 // pred_fallthru
          _
        %18 = shalt.err (0)
        %s20 = sshll.u32 [#allocation7], 4
        %s21 = int_to_ptr.vmem [resolvable:$true] %s20
        %23 = dma.hbm_to_vmem [thread:$0]  %s0, 64, %s21, [#allocation9]
        %s24 = scalar_lea.sflag [#allocation9], 1
        // Predicated region
        $region11: #{tpu_custom_call.1} parent=6 // pred_check
          _
        $region12: #{tpu_custom_call.1} parent=6 // pred_check_branch
          %26 = sbr.rel target = $region14
        $region13: #{tpu_custom_call.1} parent=6 // pred_region
          %27 = sst [smem:[#allocation12]] [#allocation15]
          %28 = sst [smem:[#allocation13]] [#allocation14]
        $region14: #{tpu_custom_call.1} parent=6 // pred_fallthru
          _
        %30 = shalt.err (0)
        %s32 = sshll.u32 [#allocation8], 4
        %s33 = int_to_ptr.vmem [resolvable:$true] %s32
        %35 = dma.hbm_to_vmem [thread:$0]  %s1, 64, %s33, %s24
        %s36 = smul.u32 4, 1
        %s37 = sshll.u32 %s36, 4
        %38 = dma.done [#allocation9], %s37
        %s39 = sshll.u32 %s36, 4
        %40 = dma.done %s24, %s39
        %v41 = vld [vmem:[#allocation7] sm:$0xf]
        %v42 = vld [vmem:[#allocation8] sm:$0xf]
        %v43 = vmul.f32 %v41, %v41
        %vm44 = vcmask 257024
        %v45 = vsel %vm44, %v43, 0.0
        %46 = vadd.xlane.f32.xlu0 %v45
        %v47 = vpop.xlane.xlu0 %46
        %v48 = vmax.f32 %v47, 1e-16
        %v49 = vrsqrt.pop %v48
        %v50 = vmul.f32 %v42, %v42
        %v51 = vsel %vm44, %v50, 0.0
        %52 = vadd.xlane.f32.xlu0 %v51
        %v53 = vpop.xlane.xlu0 %52
        %v54 = vmax.f32 %v53, 1e-16
        %v55 = vrsqrt.pop %v54
        %v56 = vmul.f32 %v41, %v49
        %v57 = vmul.f32 %v42, %v55
        %v58 = vpack.c.bf16 %v56, %v56
        %vm59 = vcmask 254976
        %60 = vst.msk [vmem:[#allocation2] sm:$0x3] %vm59, %v58
        %v61 = vpack.c.bf16 %v57, %v57
        %v63 = vunpack.c.l.b16 %v61
        %v64 = vpack.c.b16 %v63, %v63
        %v65 = vrot.slane %v64, 6
        %vm67 = vcmask 257026
        %68 = vst.msk [vmem:[#allocation2] sm:$0xc] %vm67, %v65
        %69 = vst.msk [vmem:[#allocation2 + $0x4] sm:$0xf] %vm44, 0
        %70 = vst.msk [vmem:[#allocation2 + $0x8] sm:$0xf] %vm44, 0
        %71 = vst.msk [vmem:[#allocation2 + $0xc] sm:$0xf] %vm44, 0
        %72 = vst.msk [vmem:[#allocation2 + $0x10] sm:$0xf] %vm44, 0
        %73 = vst.msk [vmem:[#allocation2 + $0x14] sm:$0xf] %vm44, 0
        %74 = vst.msk [vmem:[#allocation2 + $0x18] sm:$0xf] %vm44, 0
        %75 = vst.msk [vmem:[#allocation2 + $0x1c] sm:$0xf] %vm44, 0
        %76 = vst.msk [vmem:[#allocation2 + $0x20] sm:$0xf] %vm44, 0
        %77 = vst.msk [vmem:[#allocation2 + $0x24] sm:$0xf] %vm44, 0
        %78 = vst.msk [vmem:[#allocation2 + $0x28] sm:$0xf] %vm44, 0
        %79 = vst.msk [vmem:[#allocation2 + $0x2c] sm:$0xf] %vm44, 0
        %80 = vst.msk [vmem:[#allocation2 + $0x30] sm:$0xf] %vm44, 0
        %81 = vst.msk [vmem:[#allocation2 + $0x34] sm:$0xf] %vm44, 0
        %82 = vst.msk [vmem:[#allocation2 + $0x38] sm:$0xf] %vm44, 0
        %83 = vst.msk [vmem:[#allocation2 + $0x3c] sm:$0xf] %vm44, 0
        %v84 = vld [vmem:[#allocation2] sm:$0xf]
        %v85 = vld [vmem:[#allocation2 + $0x4] sm:$0xf]
        %v86 = vld [vmem:[#allocation2 + $0x8] sm:$0xf]
        %v87 = vld [vmem:[#allocation2 + $0xc] sm:$0xf]
        %v88 = vld [vmem:[#allocation2 + $0x10] sm:$0xf]
        %v89 = vld [vmem:[#allocation2 + $0x14] sm:$0xf]
        %v90 = vld [vmem:[#allocation2 + $0x18] sm:$0xf]
        %v91 = vld [vmem:[#allocation2 + $0x1c] sm:$0xf]
        %v92 = vld [vmem:[#allocation2 + $0x20] sm:$0xf]
        %v93 = vld [vmem:[#allocation2 + $0x24] sm:$0xf]
        %v94 = vld [vmem:[#allocation2 + $0x28] sm:$0xf]
        %v95 = vld [vmem:[#allocation2 + $0x2c] sm:$0xf]
        %v96 = vld [vmem:[#allocation2 + $0x30] sm:$0xf]
        %v97 = vld [vmem:[#allocation2 + $0x34] sm:$0xf]
        %v98 = vld [vmem:[#allocation2 + $0x38] sm:$0xf]
        %v99 = vld [vmem:[#allocation2 + $0x3c] sm:$0xf]
        %v100 = vunpack.c.l.bf16 %v84
        %v101 = vunpack.c.l.bf16 %v85
        %v102 = vunpack.c.l.bf16 %v86
        %v103 = vunpack.c.l.bf16 %v87
        %v104 = vunpack.c.l.bf16 %v88
        %v105 = vunpack.c.l.bf16 %v89
        %v106 = vunpack.c.l.bf16 %v90
        %v107 = vunpack.c.l.bf16 %v91
        %v108 = vunpack.c.l.bf16 %v92
        %v109 = vunpack.c.l.bf16 %v93
        %v110 = vunpack.c.l.bf16 %v94
        %v111 = vunpack.c.l.bf16 %v95
        %v112 = vunpack.c.l.bf16 %v96
        %v113 = vunpack.c.l.bf16 %v97
        %v114 = vunpack.c.l.bf16 %v98
        %v115 = vunpack.c.l.bf16 %v99
        %116 = vxpose.xlu0.b32.start [1/16] %v100, 128
        %117 = vxpose.xlu0.b32.cont [2/16] %v101, 128
        %118 = vxpose.xlu0.b32.cont [3/16] %v102, 128
        %119 = vxpose.xlu0.b32.cont [4/16] %v103, 128
        %120 = vxpose.xlu0.b32.cont [5/16] %v104, 128
        %121 = vxpose.xlu0.b32.cont [6/16] %v105, 128
        %122 = vxpose.xlu0.b32.cont [7/16] %v106, 128
        %123 = vxpose.xlu0.b32.cont [8/16] %v107, 128
        %124 = vxpose.xlu0.b32.cont [9/16] %v108, 128
        %125 = vxpose.xlu0.b32.cont [10/16] %v109, 128
        %126 = vxpose.xlu0.b32.cont [11/16] %v110, 128
        %127 = vxpose.xlu0.b32.cont [12/16] %v111, 128
        %128 = vxpose.xlu0.b32.cont [13/16] %v112, 128
        %129 = vxpose.xlu0.b32.cont [14/16] %v113, 128
        %130 = vxpose.xlu0.b32.cont [15/16] %v114, 128
        %131 = vxpose.xlu0.b32.end [16/16] %v115, 128
        %v132 = vpop.trf.xlu0
        %v133 = vpop.trf.xlu0
        %v134 = vpop.trf.xlu0
        %v135 = vpop.trf.xlu0
        %v136 = vpop.trf.xlu0
        %v137 = vpop.trf.xlu0
        %v138 = vpop.trf.xlu0
        %v139 = vpop.trf.xlu0
        %v140 = vpop.trf.xlu0
        %v141 = vpop.trf.xlu0
        %v142 = vpop.trf.xlu0
        %v143 = vpop.trf.xlu0
        %v144 = vpop.trf.xlu0
        %v145 = vpop.trf.xlu0
        %v146 = vpop.trf.xlu0
        %v147 = vpop.trf.xlu0
        %v148 = vpack.c.bf16 %v133, %v132
        %v149 = vpack.c.bf16 %v135, %v134
        %v152 = vunpack.c.l.b16 %v148
        %v153 = vunpack.c.h.b16 %v148
        %v154 = vunpack.c.l.b16 %v149
        %v155 = vunpack.c.h.b16 %v149
        %v156 = vpack.c.b16 %v152, %v152
        %v157 = vpack.c.b16 %v153, %v153
        %v158 = vpack.c.b16 %v154, %v154
        %v159 = vpack.c.b16 %v155, %v155
        %164 = vst [vmem:[#allocation3] sm:$0xf] %v156
        %165 = vst [vmem:[#allocation3 + $0x4] sm:$0xf] %v157
        %166 = vst [vmem:[#allocation3 + $0x8] sm:$0xf] %v158
        %167 = vst [vmem:[#allocation3 + $0xc] sm:$0xf] %v159
        %v168 = vmul.f32 %v56, %v57
        %v169 = vsel %vm44, %v168, 0.0
        %170 = vadd.xlane.f32.xlu0 %v169
        %v171 = vpop.xlane.xlu0 %170
        %v172 = vrot.slane %v171, 4
        %v173 = vadd.f32 %v171, %v172
        %v174 = vrot.slane %v173, 2
        %v175 = vadd.f32 %v173, %v174
        %v176 = vrot.slane %v175, 1
        %v177 = vadd.f32 %v175, %v176
        %s178 = vtos %v177
        %s179 = smul.f32 %s178, -4.0
        %s180 = scalar_lea.smem [#allocation4], 0
        %181 = sst [smem:[%s180]] %s179
    $region5: #{tpu_custom_call.1} parent=1 // pred_fallthru
      _
    %s182 = smul.u32 0, 128
    %s183 = sshra.s32 %s182, 3
    %s184 = sand.u32 %s182, 7
    %s185 = smul.addr %s183, 4
    %s186 = scalar_lea.vmem [#allocation2], %s185
    %v187 = vld [vmem:[%s186] sm:$0xf]
    %v188 = vld [vmem:[%s186 + $0x4] sm:$0xf]
    %v189 = vld [vmem:[%s186 + $0x8] sm:$0xf]
    %v190 = vld [vmem:[%s186 + $0xc] sm:$0xf]
    %v191 = vld [vmem:[%s186 + $0x10] sm:$0xf]
    %v192 = vld [vmem:[%s186 + $0x14] sm:$0xf]
    %v193 = vld [vmem:[%s186 + $0x18] sm:$0xf]
    %v194 = vld [vmem:[%s186 + $0x1c] sm:$0xf]
    %v195 = vld [vmem:[%s186 + $0x20] sm:$0xf]
    %v196 = vld [vmem:[%s186 + $0x24] sm:$0xf]
    %v197 = vld [vmem:[%s186 + $0x28] sm:$0xf]
    %v198 = vld [vmem:[%s186 + $0x2c] sm:$0xf]
    %v199 = vld [vmem:[%s186 + $0x30] sm:$0xf]
    %v200 = vld [vmem:[%s186 + $0x34] sm:$0xf]
    %v201 = vld [vmem:[%s186 + $0x38] sm:$0xf]
    %v202 = vld [vmem:[%s186 + $0x3c] sm:$0xf]
    %v203 = vlaneseq
    %v204 = vand.u32 %v203, 127
    %v205 = vlaneseq
    %v206 = vshrl.u32 %v205, 7
    %v207 = vadd.s32 %v206, 8
    %v208 = vadd.s32 %v206, 16
    %v209 = vadd.s32 %v206, 24
    %v210 = vadd.s32 %v206, 32
    %v211 = vadd.s32 %v206, 40
    %v212 = vadd.s32 %v206, 48
    %v213 = vadd.s32 %v206, 56
    %v214 = vadd.s32 %v206, 64
    %v215 = vadd.s32 %v206, 72
    %v216 = vadd.s32 %v206, 80
    %v217 = vadd.s32 %v206, 88
    %v218 = vadd.s32 %v206, 96
    %v219 = vadd.s32 %v206, 104
    %v220 = vadd.s32 %v206, 112
    %v221 = vadd.s32 %v206, 120
    %v222 = vstv %s182
    %v223 = vadd.s32 %v222, %v206
    %v224 = vadd.s32 %v222, %v207
    %v225 = vadd.s32 %v222, %v208
    %v226 = vadd.s32 %v222, %v209
    %v227 = vadd.s32 %v222, %v210
    %v228 = vadd.s32 %v222, %v211
    %v229 = vadd.s32 %v222, %v212
    %v230 = vadd.s32 %v222, %v213
    %v231 = vadd.s32 %v222, %v214
    %v232 = vadd.s32 %v222, %v215
    %v233 = vadd.s32 %v222, %v216
    %v234 = vadd.s32 %v222, %v217
    %v235 = vadd.s32 %v222, %v218
    %v236 = vadd.s32 %v222, %v219
    %v237 = vadd.s32 %v222, %v220
    %v238 = vadd.s32 %v222, %v221
    %v239 = vld [vmem:[#allocation3] sm:$0xf]
    %v240 = vld [vmem:[#allocation3 + $0x4] sm:$0xf]
    %v241 = vld [vmem:[#allocation3 + $0x8] sm:$0xf]
    %v242 = vld [vmem:[#allocation3 + $0xc] sm:$0xf]
    %v259 = vunpack.c.l.b16 %v187
    %v260 = vunpack.c.l.b16 %v188
    %v261 = vunpack.c.l.b16 %v189
    %v262 = vunpack.c.l.b16 %v190
    %v263 = vunpack.c.l.b16 %v191
    %v264 = vunpack.c.l.b16 %v192
    %v265 = vunpack.c.l.b16 %v193
    %v266 = vunpack.c.l.b16 %v194
    %v267 = vunpack.c.l.b16 %v195
    %v268 = vunpack.c.l.b16 %v196
    %v269 = vunpack.c.l.b16 %v197
    %v270 = vunpack.c.l.b16 %v198
    %v271 = vunpack.c.l.b16 %v199
    %v272 = vunpack.c.l.b16 %v200
    %v273 = vunpack.c.l.b16 %v201
    %v274 = vunpack.c.l.b16 %v202
    %v275 = vpack.c.b16 %v260, %v259
    %v276 = vpack.c.b16 %v262, %v261
    %v277 = vpack.c.b16 %v264, %v263
    %v278 = vpack.c.b16 %v266, %v265
    %v279 = vpack.c.b16 %v268, %v267
    %v280 = vpack.c.b16 %v270, %v269
    %v281 = vpack.c.b16 %v272, %v271
    %v282 = vpack.c.b16 %v274, %v273
    %v287 = vunpack.c.l.b16 %v239
    %v288 = vunpack.c.l.b16 %v240
    %v289 = vunpack.c.l.b16 %v241
    %v290 = vunpack.c.l.b16 %v242
    %v291 = vpack.c.b16 %v288, %v287
    %v292 = vpack.c.b16 %v290, %v289
    %vm295 = vcmask 261120
    %v297 = vsel %vm295, %v275, 0
    %v300 = vsel %vm295, %v276, 0
    %v303 = vsel %vm295, %v277, 0
    %v306 = vsel %vm295, %v278, 0
    %v309 = vsel %vm295, %v279, 0
    %v312 = vsel %vm295, %v280, 0
    %v315 = vsel %vm295, %v281, 0
    %v318 = vsel %vm295, %v282, 0
    %320 = vmatprep.subr.bf16.mxu0 0
    %321 = vmatpush1.bf16.msra.mxu0 0
    %322 = vmatprep.subr.bf16.mxu0 0
    %323 = vmatpush1.bf16.msra.mxu0 0
    %324 = vmatprep.subr.bf16.mxu0 0
    %325 = vmatpush1.bf16.msra.mxu0 0
    %326 = vmatprep.subr.bf16.mxu0 0
    %327 = vmatpush1.bf16.msra.mxu0 0
    %328 = vmatprep.subr.bf16.mxu0 0
    %329 = vmatpush1.bf16.msra.mxu0 0
    %330 = vmatprep.subr.bf16.mxu0 0
    %331 = vmatpush1.bf16.msra.mxu0 0
    %332 = vmatprep.subr.bf16.mxu0 0
    %333 = vmatpush1.bf16.msra.mxu0 %v292
    %334 = vmatprep.subr.bf16.mxu0 0
    %335 = vmatpush1.bf16.msra.mxu0 %v291
    %336 = vmatprep.subr.bf16.mxu0 0
    %337 = vmatpush2.bf16.msra.mxu0 0
    %338 = vmatprep.subr.bf16.mxu0 0
    %339 = vmatpush2.bf16.msra.mxu0 0
    %340 = vmatprep.subr.bf16.mxu0 0
    %341 = vmatpush2.bf16.msra.mxu0 0
    %342 = vmatprep.subr.bf16.mxu0 0
    %343 = vmatpush2.bf16.msra.mxu0 0
    %344 = vmatprep.subr.bf16.mxu0 0
    %345 = vmatpush2.bf16.msra.mxu0 0
    %346 = vmatprep.subr.bf16.mxu0 0
    %347 = vmatpush2.bf16.msra.mxu0 0
    %348 = vmatprep.subr.bf16.mxu0 0
    %349 = vmatpush2.bf16.msra.mxu0 0
    %350 = vmatprep.subr.bf16.mxu0 0
    %351 = vmatpush2.bf16.msra.mxu0 0
    %352 = vmatprep.mubr.bf16.mxu0 0
    %353 = vmatmul.mubr.bf16.gmra.mxu0 %v297
    %v354 = vpop.f32.mrf.mxu0
    %v355 = vadd.f32 0.0, %v354
    %v356 = vpop.f32.mrf.mxu0
    %v357 = vpop.f32.mrf.mxu0
    %v358 = vadd.f32 0.0, %v357
    %v359 = vpop.f32.mrf.mxu0
    %360 = vmatprep.mubr.bf16.mxu0 0
    %361 = vmatmul.mubr.bf16.gmra.mxu0 %v300
    %v362 = vpop.f32.mrf.mxu0
    %v363 = vadd.f32 0.0, %v362
    %v364 = vpop.f32.mrf.mxu0
    %v365 = vpop.f32.mrf.mxu0
    %v366 = vadd.f32 0.0, %v365
    %v367 = vpop.f32.mrf.mxu0
    %368 = vmatprep.mubr.bf16.mxu0 0
    %369 = vmatmul.mubr.bf16.gmra.mxu0 %v303
    %v370 = vpop.f32.mrf.mxu0
    %v371 = vadd.f32 0.0, %v370
    %v372 = vpop.f32.mrf.mxu0
    %v373 = vpop.f32.mrf.mxu0
    %v374 = vadd.f32 0.0, %v373
    %v375 = vpop.f32.mrf.mxu0
    %376 = vmatprep.mubr.bf16.mxu0 0
    %377 = vmatmul.mubr.bf16.gmra.mxu0 %v306
    %v378 = vpop.f32.mrf.mxu0
    %v379 = vadd.f32 0.0, %v378
    %v380 = vpop.f32.mrf.mxu0
    %v381 = vpop.f32.mrf.mxu0
    %v382 = vadd.f32 0.0, %v381
    %v383 = vpop.f32.mrf.mxu0
    %384 = vmatprep.mubr.bf16.mxu0 0
    %385 = vmatmul.mubr.bf16.gmra.mxu0 %v309
    %v386 = vpop.f32.mrf.mxu0
    %v387 = vadd.f32 0.0, %v386
    %v388 = vpop.f32.mrf.mxu0
    %v389 = vpop.f32.mrf.mxu0
    %v390 = vadd.f32 0.0, %v389
    %v391 = vpop.f32.mrf.mxu0
    %392 = vmatprep.mubr.bf16.mxu0 0
    %393 = vmatmul.mubr.bf16.gmra.mxu0 %v312
    %v394 = vpop.f32.mrf.mxu0
    %v395 = vadd.f32 0.0, %v394
    %v396 = vpop.f32.mrf.mxu0
    %v397 = vpop.f32.mrf.mxu0
    %v398 = vadd.f32 0.0, %v397
    %v399 = vpop.f32.mrf.mxu0
    %400 = vmatprep.mubr.bf16.mxu0 0
    %401 = vmatmul.mubr.bf16.gmra.mxu0 %v315
    %v402 = vpop.f32.mrf.mxu0
    %v403 = vadd.f32 0.0, %v402
    %v404 = vpop.f32.mrf.mxu0
    %v405 = vpop.f32.mrf.mxu0
    %v406 = vadd.f32 0.0, %v405
    %v407 = vpop.f32.mrf.mxu0
    %408 = vmatprep.mubr.bf16.mxu0 0
    %409 = vmatmul.mubr.bf16.gmra.mxu0 %v318
    %v410 = vpop.f32.mrf.mxu0
    %v411 = vadd.f32 0.0, %v410
    %v412 = vpop.f32.mrf.mxu0
    %v413 = vpop.f32.mrf.mxu0
    %v414 = vadd.f32 0.0, %v413
    %v415 = vpop.f32.mrf.mxu0
    %416 = vdwg.mxu0
    %v417 = vsub.f32 %v355, 1.0
    %v418 = vsub.f32 %v358, 1.0
    %v419 = vsub.f32 %v363, 1.0
    %v420 = vsub.f32 %v366, 1.0
    %v421 = vsub.f32 %v371, 1.0
    %v422 = vsub.f32 %v374, 1.0
    %v423 = vsub.f32 %v379, 1.0
    %v424 = vsub.f32 %v382, 1.0
    %v425 = vsub.f32 %v387, 1.0
    %v426 = vsub.f32 %v390, 1.0
    %v427 = vsub.f32 %v395, 1.0
    %v428 = vsub.f32 %v398, 1.0
    %v429 = vsub.f32 %v403, 1.0
    %v430 = vsub.f32 %v406, 1.0
    %v431 = vsub.f32 %v411, 1.0
    %v432 = vsub.f32 %v414, 1.0
    %v433 = vmul.f32 %v417, 2.0
    %v434 = vmul.f32 %v418, 2.0
    %v435 = vmul.f32 %v419, 2.0
    %v436 = vmul.f32 %v420, 2.0
    %v437 = vmul.f32 %v421, 2.0
    %v438 = vmul.f32 %v422, 2.0
    %v439 = vmul.f32 %v423, 2.0
    %v440 = vmul.f32 %v424, 2.0
    %v441 = vmul.f32 %v425, 2.0
    %v442 = vmul.f32 %v426, 2.0
    %v443 = vmul.f32 %v427, 2.0
    %v444 = vmul.f32 %v428, 2.0
    %v445 = vmul.f32 %v429, 2.0
    %v446 = vmul.f32 %v430, 2.0
    %v447 = vmul.f32 %v431, 2.0
    %v448 = vmul.f32 %v432, 2.0
    %v449 = vmul.f32 %v433, 1.442695
    %v450 = vpow.pop %v449
    %v451 = vmul.f32 %v434, 1.442695
    %v452 = vpow.pop %v451
    %v453 = vmul.f32 %v435, 1.442695
    %v454 = vpow.pop %v453
    %v455 = vmul.f32 %v436, 1.442695
    %v456 = vpow.pop %v455
    %v457 = vmul.f32 %v437, 1.442695
    %v458 = vpow.pop %v457
    %v459 = vmul.f32 %v438, 1.442695
    %v460 = vpow.pop %v459
    %v461 = vmul.f32 %v439, 1.442695
    %v462 = vpow.pop %v461
    %v463 = vmul.f32 %v440, 1.442695
    %v464 = vpow.pop %v463
    %v465 = vmul.f32 %v441, 1.442695
    %v466 = vpow.pop %v465
    %v467 = vmul.f32 %v442, 1.442695
    %v468 = vpow.pop %v467
    %v469 = vmul.f32 %v443, 1.442695
    %v470 = vpow.pop %v469
    %v471 = vmul.f32 %v444, 1.442695
    %v472 = vpow.pop %v471
    %v473 = vmul.f32 %v445, 1.442695
    %v474 = vpow.pop %v473
    %v475 = vmul.f32 %v446, 1.442695
    %v476 = vpow.pop %v475
    %v477 = vmul.f32 %v447, 1.442695
    %v478 = vpow.pop %v477
    %v479 = vmul.f32 %v448, 1.442695
    %v480 = vpow.pop %v479
    %vm481 = vcmp.eq.s32.totalorder %v204, %v223
    %vm482 = vcmp.eq.s32.totalorder %v204, %v224
    %vm483 = vcmp.eq.s32.totalorder %v204, %v225
    %vm484 = vcmp.eq.s32.totalorder %v204, %v226
    %vm485 = vcmp.eq.s32.totalorder %v204, %v227
    %vm486 = vcmp.eq.s32.totalorder %v204, %v228
    %vm487 = vcmp.eq.s32.totalorder %v204, %v229
    %vm488 = vcmp.eq.s32.totalorder %v204, %v230
    %vm489 = vcmp.eq.s32.totalorder %v204, %v231
    %vm490 = vcmp.eq.s32.totalorder %v204, %v232
    %vm491 = vcmp.eq.s32.totalorder %v204, %v233
    %vm492 = vcmp.eq.s32.totalorder %v204, %v234
    %vm493 = vcmp.eq.s32.totalorder %v204, %v235
    %vm494 = vcmp.eq.s32.totalorder %v204, %v236
    %vm495 = vcmp.eq.s32.totalorder %v204, %v237
    %vm496 = vcmp.eq.s32.totalorder %v204, %v238
    %v497 = vsel %vm481, 0.0, %v450
    %v498 = vsel %vm482, 0.0, %v452
    %v499 = vsel %vm483, 0.0, %v454
    %v500 = vsel %vm484, 0.0, %v456
    %v501 = vsel %vm485, 0.0, %v458
    %v502 = vsel %vm486, 0.0, %v460
    %v503 = vsel %vm487, 0.0, %v462
    %v504 = vsel %vm488, 0.0, %v464
    %v505 = vsel %vm489, 0.0, %v466
    %v506 = vsel %vm490, 0.0, %v468
    %v507 = vsel %vm491, 0.0, %v470
    %v508 = vsel %vm492, 0.0, %v472
    %v509 = vsel %vm493, 0.0, %v474
    %v510 = vsel %vm494, 0.0, %v476
    %v511 = vsel %vm495, 0.0, %v478
    %v512 = vsel %vm496, 0.0, %v480
    %513 = vadd.xlane.f32.xlu0 %v497
    %v514 = vpop.xlane.xlu0 %513
    %515 = vadd.xlane.f32.xlu0 %v498
    %v516 = vpop.xlane.xlu0 %515
    %517 = vadd.xlane.f32.xlu0 %v499
    %v518 = vpop.xlane.xlu0 %517
    %519 = vadd.xlane.f32.xlu0 %v500
    %v520 = vpop.xlane.xlu0 %519
    %521 = vadd.xlane.f32.xlu0 %v501
    %v522 = vpop.xlane.xlu0 %521
    %523 = vadd.xlane.f32.xlu0 %v502
    %v524 = vpop.xlane.xlu0 %523
    %525 = vadd.xlane.f32.xlu0 %v503
    %v526 = vpop.xlane.xlu0 %525
    %527 = vadd.xlane.f32.xlu0 %v504
    %v528 = vpop.xlane.xlu0 %527
    %529 = vadd.xlane.f32.xlu0 %v505
    %v530 = vpop.xlane.xlu0 %529
    %531 = vadd.xlane.f32.xlu0 %v506
    %v532 = vpop.xlane.xlu0 %531
    %533 = vadd.xlane.f32.xlu0 %v507
    %v534 = vpop.xlane.xlu0 %533
    %535 = vadd.xlane.f32.xlu0 %v508
    %v536 = vpop.xlane.xlu0 %535
    %537 = vadd.xlane.f32.xlu0 %v509
    %v538 = vpop.xlane.xlu0 %537
    %539 = vadd.xlane.f32.xlu0 %v510
    %v540 = vpop.xlane.xlu0 %539
    %541 = vadd.xlane.f32.xlu0 %v511
    %v542 = vpop.xlane.xlu0 %541
    %543 = vadd.xlane.f32.xlu0 %v512
    %v544 = vpop.xlane.xlu0 %543
    %v545 = vadd.f32 %v514, 0.0
    %v546 = vadd.f32 %v516, 0.0
    %v547 = vadd.f32 %v518, 0.0
    %v548 = vadd.f32 %v520, 0.0
    %v549 = vadd.f32 %v522, 0.0
    %v550 = vadd.f32 %v524, 0.0
    %v551 = vadd.f32 %v526, 0.0
    %v552 = vadd.f32 %v528, 0.0
    %v553 = vadd.f32 %v530, 0.0
    %v554 = vadd.f32 %v532, 0.0
    %v555 = vadd.f32 %v534, 0.0
    %v556 = vadd.f32 %v536, 0.0
    %v557 = vadd.f32 %v538, 0.0
    %v558 = vadd.f32 %v540, 0.0
    %v559 = vadd.f32 %v542, 0.0
    %v560 = vadd.f32 %v544, 0.0
    %v561 = vsub.f32 %v545, 16.240234
    %v562 = vsub.f32 %v546, 16.240234
    %v563 = vsub.f32 %v547, 16.240234
    %v564 = vsub.f32 %v548, 16.240234
    %v565 = vsub.f32 %v549, 16.240234
    %v566 = vsub.f32 %v550, 16.240234
    %v567 = vsub.f32 %v551, 16.240234
    %v568 = vsub.f32 %v552, 16.240234
    %v569 = vsub.f32 %v553, 16.240234
    %v570 = vsub.f32 %v554, 16.240234
    %v571 = vsub.f32 %v555, 16.240234
    %v572 = vsub.f32 %v556, 16.240234
    %v573 = vsub.f32 %v557, 16.240234
    %v574 = vsub.f32 %v558, 16.240234
    %v575 = vsub.f32 %v559, 16.240234
    %v576 = vsub.f32 %v560, 16.240234
    %v577 = vmax.f32 %v561, 1e-37
    %v578 = vmax.f32 %v562, 1e-37
    %v579 = vmax.f32 %v563, 1e-37
    %v580 = vmax.f32 %v564, 1e-37
    %v581 = vmax.f32 %v565, 1e-37
    %v582 = vmax.f32 %v566, 1e-37
    %v583 = vmax.f32 %v567, 1e-37
    %v584 = vmax.f32 %v568, 1e-37
    %v585 = vmax.f32 %v569, 1e-37
    %v586 = vmax.f32 %v570, 1e-37
    %v587 = vmax.f32 %v571, 1e-37
    %v588 = vmax.f32 %v572, 1e-37
    %v589 = vmax.f32 %v573, 1e-37
    %v590 = vmax.f32 %v574, 1e-37
    %v591 = vmax.f32 %v575, 1e-37
    %v592 = vmax.f32 %v576, 1e-37
    %v593 = vlog2.pop %v577
    %v594 = vmul.f32 %v593, 0.6931472
    %v595 = vlog2.pop %v578
    %v596 = vmul.f32 %v595, 0.6931472
    %v597 = vlog2.pop %v579
    %v598 = vmul.f32 %v597, 0.6931472
    %v599 = vlog2.pop %v580
    %v600 = vmul.f32 %v599, 0.6931472
    %v601 = vlog2.pop %v581
    %v602 = vmul.f32 %v601, 0.6931472
    %v603 = vlog2.pop %v582
    %v604 = vmul.f32 %v603, 0.6931472
    %v605 = vlog2.pop %v583
    %v606 = vmul.f32 %v605, 0.6931472
    %v607 = vlog2.pop %v584
    %v608 = vmul.f32 %v607, 0.6931472
    %v609 = vlog2.pop %v585
    %v610 = vmul.f32 %v609, 0.6931472
    %v611 = vlog2.pop %v586
    %v612 = vmul.f32 %v611, 0.6931472
    %v613 = vlog2.pop %v587
    %v614 = vmul.f32 %v613, 0.6931472
    %v615 = vlog2.pop %v588
    %v616 = vmul.f32 %v615, 0.6931472
    %v617 = vlog2.pop %v589
    %v618 = vmul.f32 %v617, 0.6931472
    %v619 = vlog2.pop %v590
    %v620 = vmul.f32 %v619, 0.6931472
    %v621 = vlog2.pop %v591
    %v622 = vmul.f32 %v621, 0.6931472
    %v623 = vlog2.pop %v592
    %v624 = vmul.f32 %v623, 0.6931472
    %v625 = vadd.f32 %v594, 2.0
    %v626 = vadd.f32 %v596, 2.0
    %v627 = vadd.f32 %v598, 2.0
    %v628 = vadd.f32 %v600, 2.0
    %v629 = vadd.f32 %v602, 2.0
    %v630 = vadd.f32 %v604, 2.0
    %v631 = vadd.f32 %v606, 2.0
    %v632 = vadd.f32 %v608, 2.0
    %v633 = vadd.f32 %v610, 2.0
    %v634 = vadd.f32 %v612, 2.0
    %v635 = vadd.f32 %v614, 2.0
    %v636 = vadd.f32 %v616, 2.0
    %v637 = vadd.f32 %v618, 2.0
    %v638 = vadd.f32 %v620, 2.0
    %v639 = vadd.f32 %v622, 2.0
    %v640 = vadd.f32 %v624, 2.0
    %vm641 = vcmp.lt.s32.totalorder %v223, 8
    %vm642 = vcmp.lt.s32.totalorder %v224, 8
    %vm643 = vcmp.lt.s32.totalorder %v225, 8
    %vm644 = vcmp.lt.s32.totalorder %v226, 8
    %vm645 = vcmp.lt.s32.totalorder %v227, 8
    %vm646 = vcmp.lt.s32.totalorder %v228, 8
    %vm647 = vcmp.lt.s32.totalorder %v229, 8
    %vm648 = vcmp.lt.s32.totalorder %v230, 8
    %vm649 = vcmp.lt.s32.totalorder %v231, 8
    %vm650 = vcmp.lt.s32.totalorder %v232, 8
    %vm651 = vcmp.lt.s32.totalorder %v233, 8
    %vm652 = vcmp.lt.s32.totalorder %v234, 8
    %vm653 = vcmp.lt.s32.totalorder %v235, 8
    %vm654 = vcmp.lt.s32.totalorder %v236, 8
    %vm655 = vcmp.lt.s32.totalorder %v237, 8
    %vm656 = vcmp.lt.s32.totalorder %v238, 8
    %v657 = vsel %vm641, %v625, 0.0
    %v658 = vsel %vm642, %v626, 0.0
    %v659 = vsel %vm643, %v627, 0.0
    %v660 = vsel %vm644, %v628, 0.0
    %v661 = vsel %vm645, %v629, 0.0
    %v662 = vsel %vm646, %v630, 0.0
    %v663 = vsel %vm647, %v631, 0.0
    %v664 = vsel %vm648, %v632, 0.0
    %v665 = vsel %vm649, %v633, 0.0
    %v666 = vsel %vm650, %v634, 0.0
    %v667 = vsel %vm651, %v635, 0.0
    %v668 = vsel %vm652, %v636, 0.0
    %v669 = vsel %vm653, %v637, 0.0
    %v670 = vsel %vm654, %v638, 0.0
    %v671 = vsel %vm655, %v639, 0.0
    %v672 = vsel %vm656, %v640, 0.0
    %s673 = sld [smem:[#allocation4]]
    %vm674 = vcmask 7168
    %v675 = vsel %vm674, %v657, 0.0
    %v676 = vsel %vm674, %v658, 0.0
    %v677 = vadd.f32 %v675, %v676
    %v678 = vsel %vm674, %v659, 0.0
    %v679 = vadd.f32 %v677, %v678
    %v680 = vsel %vm674, %v660, 0.0
    %v681 = vadd.f32 %v679, %v680
    %v682 = vsel %vm674, %v661, 0.0
    %v683 = vadd.f32 %v681, %v682
    %v684 = vsel %vm674, %v662, 0.0
    %v685 = vadd.f32 %v683, %v684
    %v686 = vsel %vm674, %v663, 0.0
    %v687 = vadd.f32 %v685, %v686
    %v688 = vsel %vm674, %v664, 0.0
    %v689 = vadd.f32 %v687, %v688
    %v690 = vsel %vm674, %v665, 0.0
    %v691 = vadd.f32 %v689, %v690
    %v692 = vsel %vm674, %v666, 0.0
    %v693 = vadd.f32 %v691, %v692
    %v694 = vsel %vm674, %v667, 0.0
    %v695 = vadd.f32 %v693, %v694
    %v696 = vsel %vm674, %v668, 0.0
    %v697 = vadd.f32 %v695, %v696
    %v698 = vsel %vm674, %v669, 0.0
    %v699 = vadd.f32 %v697, %v698
    %v700 = vsel %vm674, %v670, 0.0
    %v701 = vadd.f32 %v699, %v700
    %v702 = vsel %vm674, %v671, 0.0
    %v703 = vadd.f32 %v701, %v702
    %v704 = vsel %vm674, %v672, 0.0
    %v705 = vadd.f32 %v703, %v704
    %706 = vadd.xlane.f32.xlu0 %v705
    %v707 = vpop.xlane.xlu0 %706
    %v708 = vrot.slane %v707, 4
    %v709 = vadd.f32 %v707, %v708
    %v710 = vrot.slane %v709, 2
    %v711 = vadd.f32 %v709, %v710
    %v712 = vrot.slane %v711, 1
    %v713 = vadd.f32 %v711, %v712
    %s714 = vtos %v713
    %s715 = sadd.f32 %s673, %s714
    %s716 = scalar_lea.smem [#allocation4], 0
    %717 = sst [smem:[%s716]] %s715
    // Predicated region
    $region15: #{tpu_custom_call.1} parent=1 // pred_check
      %p718 = pneg %p9
    $region16: #{tpu_custom_call.1} parent=1 // pred_check_branch
      %720 = sbr.rel (%p718) target = $region18
    $region17: #{tpu_custom_call.1} parent=1 // pred_region
      %s721 = sld [smem:[#allocation4]]
      %v722 = vrcp.pop 8.0
      %s723 = vtos %v722
      %s724 = smul.f32 %s721, %s723
      %s725 = scalar_lea.smem [#allocation5], 0
      %726 = sst [smem:[%s725]] %s724
    $region18: #{tpu_custom_call.1} parent=1 // pred_fallthru
      _
    // Predicated region
    $region19: #{tpu_custom_call.1} parent=1 // pred_check
      _
    $region20: #{tpu_custom_call.1} parent=1 // pred_check_branch
      %728 = sbr.rel (0) target = $region22
    $region21: #{tpu_custom_call.1} parent=1 // pred_region
      %s730 = ssub.s32 16, 16
      %731 = vsyncadd [#allocation6], %s730
      %734 = dma.smem_to_hbm [#allocation5], 16, %s2, [#allocation6]
    $region22: #{tpu_custom_call.1} parent=1 // pred_fallthru
      _
    // Predicated region
    $region23: #{tpu_custom_call.1} parent=1 // pred_check
      _
    $region24: #{tpu_custom_call.1} parent=1 // pred_check_branch
      %736 = sbr.rel (0) target = $region26
    $region25: #{tpu_custom_call.1} parent=1 // pred_region
      %737 = dma.done [#allocation6], 16
    $region26: #{tpu_custom_call.1} parent=1 // pred_fallthru
      _
    %738 = sfence
    %739 = vsyncpa [#allocation6], 1

</llo_original>
